<compile_context>
chip_gen: v7x
topology: tpu7x:2x2x1
jax: 0.10.0
libtpu: 0.0.40
codegen_flags: <defaults>
</compile_context>

<pallas_src>
import functools

import jax
import jax.numpy as jnp
from jax.experimental import pallas as pl
from jax.experimental.pallas import tpu as pltpu

# Fixed, non-trainable high-pass kernel from the PyTorch module.
HIGHPASS_KERNEL = (
    (-1.0, -1.0, -1.0),
    (-1.0,  8.0, -1.0),
    (-1.0, -1.0, -1.0),
)


def _highpass_stencil_kernel(x_ref, o_ref, *, H, W, taps):
    """x_ref: (TB, H+2, W+2) padded input block; o_ref: (TB, H, W) output block."""
    xp = x_ref[...]                       # load the whole VMEM tile once
    acc = None
    for dy in range(3):                   # static 3x3 taps -> 9 shifted adds (VPU)
        for dx in range(3):
            w = taps[dy][dx]
            if w == 0.0:
                continue
            term = w * xp[:, dy:dy + H, dx:dx + W]
            acc = term if acc is None else acc + term
    o_ref[...] = acc.astype(o_ref.dtype)


def highpass_conv(x_nchw, taps=HIGHPASS_KERNEL, slab_budget_bytes=4 << 20):
    """Depthwise 3x3 conv (stride 1, pad 1) with a shared fixed kernel. NCHW in/out."""
    n, c, h, w = x_nchw.shape
    nc = n * c
    hp, wp = h + 2, w + 2

    x = x_nchw.reshape(nc, h, w)
    xpad = jnp.pad(x, ((0, 0), (1, 1), (1, 1)))          # zero halo (padding=1)

    # Slabs per grid step: amortize per-step pipeline overhead while keeping the
    # double-buffered input block comfortably inside VMEM on every TPU gen.
    slab_bytes = hp * wp * x.dtype.itemsize
    tb = max(1, min(nc, slab_budget_bytes // max(slab_bytes, 1)))
    nc_pad = ((nc + tb - 1) // tb) * tb
    if nc_pad != nc:                                      # pad only when needed
        xpad = jnp.pad(xpad, ((0, nc_pad - nc), (0, 0), (0, 0)))

    out = pl.pallas_call(
        functools.partial(_highpass_stencil_kernel, H=h, W=w, taps=taps),
        out_shape=jax.ShapeDtypeStruct((nc_pad, h, w), x_nchw.dtype),
        grid_spec=pltpu.PrefetchScalarGridSpec(
            num_scalar_prefetch=0,
            grid=(nc_pad // tb,),
            in_specs=[pl.BlockSpec((tb, hp, wp), lambda i: (i, 0, 0))],
            out_specs=pl.BlockSpec((tb, h, w), lambda i: (i, 0, 0)),
        ),
        compiler_params=pltpu.CompilerParams(
            # Independent slab axis -> shardable across TensorCores (v7x).
            # No vmem_limit_bytes override: footprint is tiny, stays legal on v7x.
            dimension_semantics=("parallel",),
        ),
    )(xpad)

    return out[:nc].reshape(n, c, h, w)


def _reference_highpass(x_nchw, taps=HIGHPASS_KERNEL):
    """Pure-JAX elementwise reference (exact f32, no MXU), for verification."""
    n, c, h, w = x_nchw.shape
    xp = jnp.pad(x_nchw, ((0, 0), (0, 0), (1, 1), (1, 1)))
    acc = jnp.zeros_like(x_nchw)
    for dy in range(3):
        for dx in range(3):
            acc = acc + taps[dy][dx] * xp[:, :, dy:dy + h, dx:dx + w]
    return acc


if __name__ == "__main__":
    key = jax.random.PRNGKey(0)
    batch, channels, height, width = 2, 5, 16, 16   # module default: channels=5
    x = jax.random.normal(key, (batch, channels, height, width), jnp.float32)

    fwd = jax.jit(highpass_conv)
    y = fwd(x)
    jax.block_until_ready(y)

    assert y.shape == x.shape and y.dtype == x.dtype
    assert bool(jnp.all(jnp.isfinite(y)))
    ref = _reference_highpass(x)
    assert bool(jnp.allclose(y, ref, atol=1e-4, rtol=1e-4))
    print("KERNEL_OK")
</pallas_src>

<mosaic_0001>
module attributes {stable_mosaic.version = 11 : i64} {
  func.func @_highpass_stencil_kernel(%arg0: i32, %arg1: memref<10x18x18xf32, #tpu.memory_space<vmem>>, %arg2: memref<10x16x16xf32, #tpu.memory_space<vmem>>) attributes {dimension_semantics = [#tpu.dimension_semantics<parallel>], iteration_bounds = array<i64: 1>, scalar_prefetch = 0 : i64, scratch_operands = 0 : i64, tpu.core_type = #tpu.core_type<tc>, window_params = [{transform_indices = @transform_0, window_bounds = array<i64: 10, 18, 18>}, {transform_indices = @transform_1, window_bounds = array<i64: 10, 16, 16>}]} {
    %c0 = arith.constant 0 : index
    %c0_0 = arith.constant 0 : index
    %c0_1 = arith.constant 0 : index
    %0 = vector.load %arg1[%c0, %c0_0, %c0_1] : memref<10x18x18xf32, #tpu.memory_space<vmem>>, vector<10x18x18xf32>
    %1 = vector.extract_strided_slice %0 {offsets = [0, 0, 0], sizes = [10, 16, 16], strides = [1, 1, 1]} : vector<10x18x18xf32> to vector<10x16x16xf32>
    %cst = arith.constant -1.000000e+00 : f32
    %2 = vector.broadcast %cst : f32 to vector<10x16x16xf32>
    %3 = arith.mulf %2, %1 : vector<10x16x16xf32>
    %4 = vector.extract_strided_slice %0 {offsets = [0, 0, 1], sizes = [10, 16, 16], strides = [1, 1, 1]} : vector<10x18x18xf32> to vector<10x16x16xf32>
    %cst_2 = arith.constant -1.000000e+00 : f32
    %5 = vector.broadcast %cst_2 : f32 to vector<10x16x16xf32>
    %6 = arith.mulf %5, %4 : vector<10x16x16xf32>
    %7 = arith.addf %3, %6 : vector<10x16x16xf32>
    %8 = vector.extract_strided_slice %0 {offsets = [0, 0, 2], sizes = [10, 16, 16], strides = [1, 1, 1]} : vector<10x18x18xf32> to vector<10x16x16xf32>
    %cst_3 = arith.constant -1.000000e+00 : f32
    %9 = vector.broadcast %cst_3 : f32 to vector<10x16x16xf32>
    %10 = arith.mulf %9, %8 : vector<10x16x16xf32>
    %11 = arith.addf %7, %10 : vector<10x16x16xf32>
    %12 = vector.extract_strided_slice %0 {offsets = [0, 1, 0], sizes = [10, 16, 16], strides = [1, 1, 1]} : vector<10x18x18xf32> to vector<10x16x16xf32>
    %cst_4 = arith.constant -1.000000e+00 : f32
    %13 = vector.broadcast %cst_4 : f32 to vector<10x16x16xf32>
    %14 = arith.mulf %13, %12 : vector<10x16x16xf32>
    %15 = arith.addf %11, %14 : vector<10x16x16xf32>
    %16 = vector.extract_strided_slice %0 {offsets = [0, 1, 1], sizes = [10, 16, 16], strides = [1, 1, 1]} : vector<10x18x18xf32> to vector<10x16x16xf32>
    %cst_5 = arith.constant 8.000000e+00 : f32
    %17 = vector.broadcast %cst_5 : f32 to vector<10x16x16xf32>
    %18 = arith.mulf %17, %16 : vector<10x16x16xf32>
    %19 = arith.addf %15, %18 : vector<10x16x16xf32>
    %20 = vector.extract_strided_slice %0 {offsets = [0, 1, 2], sizes = [10, 16, 16], strides = [1, 1, 1]} : vector<10x18x18xf32> to vector<10x16x16xf32>
    %cst_6 = arith.constant -1.000000e+00 : f32
    %21 = vector.broadcast %cst_6 : f32 to vector<10x16x16xf32>
    %22 = arith.mulf %21, %20 : vector<10x16x16xf32>
    %23 = arith.addf %19, %22 : vector<10x16x16xf32>
    %24 = vector.extract_strided_slice %0 {offsets = [0, 2, 0], sizes = [10, 16, 16], strides = [1, 1, 1]} : vector<10x18x18xf32> to vector<10x16x16xf32>
    %cst_7 = arith.constant -1.000000e+00 : f32
    %25 = vector.broadcast %cst_7 : f32 to vector<10x16x16xf32>
    %26 = arith.mulf %25, %24 : vector<10x16x16xf32>
    %27 = arith.addf %23, %26 : vector<10x16x16xf32>
    %28 = vector.extract_strided_slice %0 {offsets = [0, 2, 1], sizes = [10, 16, 16], strides = [1, 1, 1]} : vector<10x18x18xf32> to vector<10x16x16xf32>
    %cst_8 = arith.constant -1.000000e+00 : f32
    %29 = vector.broadcast %cst_8 : f32 to vector<10x16x16xf32>
    %30 = arith.mulf %29, %28 : vector<10x16x16xf32>
    %31 = arith.addf %27, %30 : vector<10x16x16xf32>
    %32 = vector.extract_strided_slice %0 {offsets = [0, 2, 2], sizes = [10, 16, 16], strides = [1, 1, 1]} : vector<10x18x18xf32> to vector<10x16x16xf32>
    %cst_9 = arith.constant -1.000000e+00 : f32
    %33 = vector.broadcast %cst_9 : f32 to vector<10x16x16xf32>
    %34 = arith.mulf %33, %32 : vector<10x16x16xf32>
    %35 = arith.addf %31, %34 : vector<10x16x16xf32>
    %c0_10 = arith.constant 0 : index
    %c0_11 = arith.constant 0 : index
    %c0_12 = arith.constant 0 : index
    %36 = vector.load %arg2[%c0_10, %c0_11, %c0_12] : memref<10x16x16xf32, #tpu.memory_space<vmem>>, vector<10x16x16xf32>
    tpu.vector_store %arg2[%c0_10, %c0_11, %c0_12], %35 {strides = array<i32>} : memref<10x16x16xf32, #tpu.memory_space<vmem>>, vector<10x16x16xf32>,
    return
  }
  func.func @transform_0(%arg0: i32) -> (i32, i32, i32) {
    %c0_i32 = arith.constant 0 : i32
    %c0_i32_0 = arith.constant 0 : i32
    %c0_i32_1 = arith.constant 0 : i32
    return %arg0, %c0_i32, %c0_i32_0 : i32, i32, i32
  }
  func.func @transform_1(%arg0: i32) -> (i32, i32, i32) {
    %c0_i32 = arith.constant 0 : i32
    %c0_i32_0 = arith.constant 0 : i32
    %c0_i32_1 = arith.constant 0 : i32
    return %arg0, %c0_i32, %c0_i32_0 : i32, i32, i32
  }
}

</mosaic_0001>

<llo_original>
// kernel: highpass_conv.1
$region0: #{highpass_conv.1}
  #allocation0 [shape = 'u32[]', space=smem, size = 0x4, offset = 0x4, fixed_abs, tag = 'smem constant byte address 0x4 - core index']
  #allocation1 [shape = 'u32[144,128]{1,0:T(1,128)}', space=vmem, size = 0x12000, scoped, tag = 'internal scratch']
  %s0 = inlined_call_operand.vmem [shape: f32[10,18,18], index: 0, kind: input, shape index: {}]
  %s1 = inlined_call_operand.hbm [shape: f32[10,16,16], index: 1, kind: output, shape index: {}]
  %s2 = sld [smem:[#allocation0]]
  $region14: #{highpass_conv.1} parent=0
    _
  %s4 = ssub.s32 1, %s2
  %s5 = scalar_select 0, %s4, %s2
  $region1: #{highpass_conv.1} parent=0
    #allocation2 [shape = 'u8[81920]{0}', space=vmem, size = 0x14000, scoped, tag = 'output window, operand 0, single buffered']
    #allocation3 [shape = 's32[1]{0}', space=sflag, size = 0x4, scoped, tag = 'scoped memory for highpass_conv.1']
    %6 = vsyncpa [#allocation3], 0
    // Predicated region
    $region2: #{highpass_conv.1} parent=1 // pred_check
      _
    $region3: #{highpass_conv.1} parent=1 // pred_check_branch
      %8 = sbr.rel (0) target = $region5
    $region4: #{highpass_conv.1} parent=1 // pred_region
      _
    $region5: #{highpass_conv.1} parent=1 // pred_fallthru
      _
    %v9 = vld [vmem:[%s0] sm:$0xff]
    %v10 = vld [vmem:[%s0 + $0x8] sm:$0xff]
    %v11 = vld [vmem:[%s0 + $0x10] sm:$0x3]
    %v12 = vld [vmem:[%s0 + $0x18] sm:$0xff]
    %v13 = vld [vmem:[%s0 + $0x20] sm:$0xff]
    %v14 = vld [vmem:[%s0 + $0x28] sm:$0x3]
    %v15 = vld [vmem:[%s0 + $0x30] sm:$0xff]
    %v16 = vld [vmem:[%s0 + $0x38] sm:$0xff]
    %v17 = vld [vmem:[%s0 + $0x40] sm:$0x3]
    %v18 = vld [vmem:[%s0 + $0x48] sm:$0xff]
    %v19 = vld [vmem:[%s0 + $0x50] sm:$0xff]
    %v20 = vld [vmem:[%s0 + $0x58] sm:$0x3]
    %v21 = vld [vmem:[%s0 + $0x60] sm:$0xff]
    %v22 = vld [vmem:[%s0 + $0x68] sm:$0xff]
    %v23 = vld [vmem:[%s0 + $0x70] sm:$0x3]
    %v24 = vld [vmem:[%s0 + $0x78] sm:$0xff]
    %v25 = vld [vmem:[%s0 + $0x80] sm:$0xff]
    %v26 = vld [vmem:[%s0 + $0x88] sm:$0x3]
    %v27 = vld [vmem:[%s0 + $0x90] sm:$0xff]
    %v28 = vld [vmem:[%s0 + $0x98] sm:$0xff]
    %v29 = vld [vmem:[%s0 + $0xa0] sm:$0x3]
    %v30 = vld [vmem:[%s0 + $0xa8] sm:$0xff]
    %v31 = vld [vmem:[%s0 + $0xb0] sm:$0xff]
    %v32 = vld [vmem:[%s0 + $0xb8] sm:$0x3]
    %v33 = vld [vmem:[%s0 + $0xc0] sm:$0xff]
    %v34 = vld [vmem:[%s0 + $0xc8] sm:$0xff]
    %v35 = vld [vmem:[%s0 + $0xd0] sm:$0x3]
    %v36 = vld [vmem:[%s0 + $0xd8] sm:$0xff]
    %v37 = vld [vmem:[%s0 + $0xe0] sm:$0xff]
    %v38 = vld [vmem:[%s0 + $0xe8] sm:$0x3]
    %v39 = vmul.f32 %v9, -1.0
    %v40 = vmul.f32 %v10, -1.0
    %v41 = vmul.f32 %v12, -1.0
    %v42 = vmul.f32 %v13, -1.0
    %v43 = vmul.f32 %v15, -1.0
    %v44 = vmul.f32 %v16, -1.0
    %v45 = vmul.f32 %v18, -1.0
    %v46 = vmul.f32 %v19, -1.0
    %v47 = vmul.f32 %v21, -1.0
    %v48 = vmul.f32 %v22, -1.0
    %v49 = vmul.f32 %v24, -1.0
    %v50 = vmul.f32 %v25, -1.0
    %v51 = vmul.f32 %v27, -1.0
    %v52 = vmul.f32 %v28, -1.0
    %v53 = vmul.f32 %v30, -1.0
    %v54 = vmul.f32 %v31, -1.0
    %v55 = vmul.f32 %v33, -1.0
    %v56 = vmul.f32 %v34, -1.0
    %v57 = vmul.f32 %v36, -1.0
    %v58 = vmul.f32 %v37, -1.0
    %79 = vrot.lane.b32.xlu0 %v39, 127
    %v80 = vpop.permute.xlu0 %79
    %81 = vrot.lane.b32.xlu0 %v40, 127
    %v82 = vpop.permute.xlu0 %81
    %83 = vrot.lane.b32.xlu0 %v41, 127
    %v84 = vpop.permute.xlu0 %83
    %85 = vrot.lane.b32.xlu0 %v42, 127
    %v86 = vpop.permute.xlu0 %85
    %87 = vrot.lane.b32.xlu0 %v43, 127
    %v88 = vpop.permute.xlu0 %87
    %89 = vrot.lane.b32.xlu0 %v44, 127
    %v90 = vpop.permute.xlu0 %89
    %91 = vrot.lane.b32.xlu0 %v45, 127
    %v92 = vpop.permute.xlu0 %91
    %93 = vrot.lane.b32.xlu0 %v46, 127
    %v94 = vpop.permute.xlu0 %93
    %95 = vrot.lane.b32.xlu0 %v47, 127
    %v96 = vpop.permute.xlu0 %95
    %97 = vrot.lane.b32.xlu0 %v48, 127
    %v98 = vpop.permute.xlu0 %97
    %99 = vrot.lane.b32.xlu0 %v49, 127
    %v100 = vpop.permute.xlu0 %99
    %101 = vrot.lane.b32.xlu0 %v50, 127
    %v102 = vpop.permute.xlu0 %101
    %103 = vrot.lane.b32.xlu0 %v51, 127
    %v104 = vpop.permute.xlu0 %103
    %105 = vrot.lane.b32.xlu0 %v52, 127
    %v106 = vpop.permute.xlu0 %105
    %107 = vrot.lane.b32.xlu0 %v53, 127
    %v108 = vpop.permute.xlu0 %107
    %109 = vrot.lane.b32.xlu0 %v54, 127
    %v110 = vpop.permute.xlu0 %109
    %111 = vrot.lane.b32.xlu0 %v55, 127
    %v112 = vpop.permute.xlu0 %111
    %113 = vrot.lane.b32.xlu0 %v56, 127
    %v114 = vpop.permute.xlu0 %113
    %115 = vrot.lane.b32.xlu0 %v57, 127
    %v116 = vpop.permute.xlu0 %115
    %117 = vrot.lane.b32.xlu0 %v58, 127
    %v118 = vpop.permute.xlu0 %117
    %v139 = vadd.f32 %v39, %v80
    %v140 = vadd.f32 %v40, %v82
    %v141 = vadd.f32 %v41, %v84
    %v142 = vadd.f32 %v42, %v86
    %v143 = vadd.f32 %v43, %v88
    %v144 = vadd.f32 %v44, %v90
    %v145 = vadd.f32 %v45, %v92
    %v146 = vadd.f32 %v46, %v94
    %v147 = vadd.f32 %v47, %v96
    %v148 = vadd.f32 %v48, %v98
    %v149 = vadd.f32 %v49, %v100
    %v150 = vadd.f32 %v50, %v102
    %v151 = vadd.f32 %v51, %v104
    %v152 = vadd.f32 %v52, %v106
    %v153 = vadd.f32 %v53, %v108
    %v154 = vadd.f32 %v54, %v110
    %v155 = vadd.f32 %v55, %v112
    %v156 = vadd.f32 %v56, %v114
    %v157 = vadd.f32 %v57, %v116
    %v158 = vadd.f32 %v58, %v118
    %159 = vrot.lane.b32.xlu0 %v39, 126
    %v160 = vpop.permute.xlu0 %159
    %161 = vrot.lane.b32.xlu0 %v40, 126
    %v162 = vpop.permute.xlu0 %161
    %163 = vrot.lane.b32.xlu0 %v41, 126
    %v164 = vpop.permute.xlu0 %163
    %165 = vrot.lane.b32.xlu0 %v42, 126
    %v166 = vpop.permute.xlu0 %165
    %167 = vrot.lane.b32.xlu0 %v43, 126
    %v168 = vpop.permute.xlu0 %167
    %169 = vrot.lane.b32.xlu0 %v44, 126
    %v170 = vpop.permute.xlu0 %169
    %171 = vrot.lane.b32.xlu0 %v45, 126
    %v172 = vpop.permute.xlu0 %171
    %173 = vrot.lane.b32.xlu0 %v46, 126
    %v174 = vpop.permute.xlu0 %173
    %175 = vrot.lane.b32.xlu0 %v47, 126
    %v176 = vpop.permute.xlu0 %175
    %177 = vrot.lane.b32.xlu0 %v48, 126
    %v178 = vpop.permute.xlu0 %177
    %179 = vrot.lane.b32.xlu0 %v49, 126
    %v180 = vpop.permute.xlu0 %179
    %181 = vrot.lane.b32.xlu0 %v50, 126
    %v182 = vpop.permute.xlu0 %181
    %183 = vrot.lane.b32.xlu0 %v51, 126
    %v184 = vpop.permute.xlu0 %183
    %185 = vrot.lane.b32.xlu0 %v52, 126
    %v186 = vpop.permute.xlu0 %185
    %187 = vrot.lane.b32.xlu0 %v53, 126
    %v188 = vpop.permute.xlu0 %187
    %189 = vrot.lane.b32.xlu0 %v54, 126
    %v190 = vpop.permute.xlu0 %189
    %191 = vrot.lane.b32.xlu0 %v55, 126
    %v192 = vpop.permute.xlu0 %191
    %193 = vrot.lane.b32.xlu0 %v56, 126
    %v194 = vpop.permute.xlu0 %193
    %195 = vrot.lane.b32.xlu0 %v57, 126
    %v196 = vpop.permute.xlu0 %195
    %197 = vrot.lane.b32.xlu0 %v58, 126
    %v198 = vpop.permute.xlu0 %197
    %v219 = vadd.f32 %v139, %v160
    %v220 = vadd.f32 %v140, %v162
    %v221 = vadd.f32 %v141, %v164
    %v222 = vadd.f32 %v142, %v166
    %v223 = vadd.f32 %v143, %v168
    %v224 = vadd.f32 %v144, %v170
    %v225 = vadd.f32 %v145, %v172
    %v226 = vadd.f32 %v146, %v174
    %v227 = vadd.f32 %v147, %v176
    %v228 = vadd.f32 %v148, %v178
    %v229 = vadd.f32 %v149, %v180
    %v230 = vadd.f32 %v150, %v182
    %v231 = vadd.f32 %v151, %v184
    %v232 = vadd.f32 %v152, %v186
    %v233 = vadd.f32 %v153, %v188
    %v234 = vadd.f32 %v154, %v190
    %v235 = vadd.f32 %v155, %v192
    %v236 = vadd.f32 %v156, %v194
    %v237 = vadd.f32 %v157, %v196
    %v238 = vadd.f32 %v158, %v198
    %v239 = vmul.f32 %v11, -1.0
    %v240 = vmul.f32 %v14, -1.0
    %v241 = vmul.f32 %v17, -1.0
    %v242 = vmul.f32 %v20, -1.0
    %v243 = vmul.f32 %v23, -1.0
    %v244 = vmul.f32 %v26, -1.0
    %v245 = vmul.f32 %v29, -1.0
    %v246 = vmul.f32 %v32, -1.0
    %v247 = vmul.f32 %v35, -1.0
    %v248 = vmul.f32 %v38, -1.0
    %vm259 = vcmask 1046528
    %v260 = vrot.slane %v39, 1
    %v261 = vrot.slane %v40, 1
    %v262 = vsel %vm259, %v260, %v261
    %v263 = vrot.slane %v239, 1
    %v264 = vsel %vm259, %v261, %v263
    %v265 = vrot.slane %v41, 1
    %v266 = vrot.slane %v42, 1
    %v267 = vsel %vm259, %v265, %v266
    %v268 = vrot.slane %v240, 1
    %v269 = vsel %vm259, %v266, %v268
    %v270 = vrot.slane %v43, 1
    %v271 = vrot.slane %v44, 1
    %v272 = vsel %vm259, %v270, %v271
    %v273 = vrot.slane %v241, 1
    %v274 = vsel %vm259, %v271, %v273
    %v275 = vrot.slane %v45, 1
    %v276 = vrot.slane %v46, 1
    %v277 = vsel %vm259, %v275, %v276
    %v278 = vrot.slane %v242, 1
    %v279 = vsel %vm259, %v276, %v278
    %v280 = vrot.slane %v47, 1
    %v281 = vrot.slane %v48, 1
    %v282 = vsel %vm259, %v280, %v281
    %v283 = vrot.slane %v243, 1
    %v284 = vsel %vm259, %v281, %v283
    %v285 = vrot.slane %v49, 1
    %v286 = vrot.slane %v50, 1
    %v287 = vsel %vm259, %v285, %v286
    %v288 = vrot.slane %v244, 1
    %v289 = vsel %vm259, %v286, %v288
    %v290 = vrot.slane %v51, 1
    %v291 = vrot.slane %v52, 1
    %v292 = vsel %vm259, %v290, %v291
    %v293 = vrot.slane %v245, 1
    %v294 = vsel %vm259, %v291, %v293
    %v295 = vrot.slane %v53, 1
    %v296 = vrot.slane %v54, 1
    %v297 = vsel %vm259, %v295, %v296
    %v298 = vrot.slane %v246, 1
    %v299 = vsel %vm259, %v296, %v298
    %v300 = vrot.slane %v55, 1
    %v301 = vrot.slane %v56, 1
    %v302 = vsel %vm259, %v300, %v301
    %v303 = vrot.slane %v247, 1
    %v304 = vsel %vm259, %v301, %v303
    %v305 = vrot.slane %v57, 1
    %v306 = vrot.slane %v58, 1
    %v307 = vsel %vm259, %v305, %v306
    %v308 = vrot.slane %v248, 1
    %v309 = vsel %vm259, %v306, %v308
    %v330 = vadd.f32 %v219, %v262
    %v331 = vadd.f32 %v220, %v264
    %v332 = vadd.f32 %v221, %v267
    %v333 = vadd.f32 %v222, %v269
    %v334 = vadd.f32 %v223, %v272
    %v335 = vadd.f32 %v224, %v274
    %v336 = vadd.f32 %v225, %v277
    %v337 = vadd.f32 %v226, %v279
    %v338 = vadd.f32 %v227, %v282
    %v339 = vadd.f32 %v228, %v284
    %v340 = vadd.f32 %v229, %v287
    %v341 = vadd.f32 %v230, %v289
    %v342 = vadd.f32 %v231, %v292
    %v343 = vadd.f32 %v232, %v294
    %v344 = vadd.f32 %v233, %v297
    %v345 = vadd.f32 %v234, %v299
    %v346 = vadd.f32 %v235, %v302
    %v347 = vadd.f32 %v236, %v304
    %v348 = vadd.f32 %v237, %v307
    %v349 = vadd.f32 %v238, %v309
    %v350 = vmul.f32 %v9, 8.0
    %v351 = vmul.f32 %v10, 8.0
    %v352 = vmul.f32 %v11, 8.0
    %v353 = vmul.f32 %v12, 8.0
    %v354 = vmul.f32 %v13, 8.0
    %v355 = vmul.f32 %v14, 8.0
    %v356 = vmul.f32 %v15, 8.0
    %v357 = vmul.f32 %v16, 8.0
    %v358 = vmul.f32 %v17, 8.0
    %v359 = vmul.f32 %v18, 8.0
    %v360 = vmul.f32 %v19, 8.0
    %v361 = vmul.f32 %v20, 8.0
    %v362 = vmul.f32 %v21, 8.0
    %v363 = vmul.f32 %v22, 8.0
    %v364 = vmul.f32 %v23, 8.0
    %v365 = vmul.f32 %v24, 8.0
    %v366 = vmul.f32 %v25, 8.0
    %v367 = vmul.f32 %v26, 8.0
    %v368 = vmul.f32 %v27, 8.0
    %v369 = vmul.f32 %v28, 8.0
    %v370 = vmul.f32 %v29, 8.0
    %v371 = vmul.f32 %v30, 8.0
    %v372 = vmul.f32 %v31, 8.0
    %v373 = vmul.f32 %v32, 8.0
    %v374 = vmul.f32 %v33, 8.0
    %v375 = vmul.f32 %v34, 8.0
    %v376 = vmul.f32 %v35, 8.0
    %v377 = vmul.f32 %v36, 8.0
    %v378 = vmul.f32 %v37, 8.0
    %v379 = vmul.f32 %v38, 8.0
    %v410 = vrot.slane %v350, 1
    %v411 = vrot.slane %v351, 1
    %v412 = vsel %vm259, %v410, %v411
    %v413 = vrot.slane %v352, 1
    %v414 = vsel %vm259, %v411, %v413
    %v415 = vrot.slane %v353, 1
    %v416 = vrot.slane %v354, 1
    %v417 = vsel %vm259, %v415, %v416
    %v418 = vrot.slane %v355, 1
    %v419 = vsel %vm259, %v416, %v418
    %v420 = vrot.slane %v356, 1
    %v421 = vrot.slane %v357, 1
    %v422 = vsel %vm259, %v420, %v421
    %v423 = vrot.slane %v358, 1
    %v424 = vsel %vm259, %v421, %v423
    %v425 = vrot.slane %v359, 1
    %v426 = vrot.slane %v360, 1
    %v427 = vsel %vm259, %v425, %v426
    %v428 = vrot.slane %v361, 1
    %v429 = vsel %vm259, %v426, %v428
    %v430 = vrot.slane %v362, 1
    %v431 = vrot.slane %v363, 1
    %v432 = vsel %vm259, %v430, %v431
    %v433 = vrot.slane %v364, 1
    %v434 = vsel %vm259, %v431, %v433
    %v435 = vrot.slane %v365, 1
    %v436 = vrot.slane %v366, 1
    %v437 = vsel %vm259, %v435, %v436
    %v438 = vrot.slane %v367, 1
    %v439 = vsel %vm259, %v436, %v438
    %v440 = vrot.slane %v368, 1
    %v441 = vrot.slane %v369, 1
    %v442 = vsel %vm259, %v440, %v441
    %v443 = vrot.slane %v370, 1
    %v444 = vsel %vm259, %v441, %v443
    %v445 = vrot.slane %v371, 1
    %v446 = vrot.slane %v372, 1
    %v447 = vsel %vm259, %v445, %v446
    %v448 = vrot.slane %v373, 1
    %v449 = vsel %vm259, %v446, %v448
    %v450 = vrot.slane %v374, 1
    %v451 = vrot.slane %v375, 1
    %v452 = vsel %vm259, %v450, %v451
    %v453 = vrot.slane %v376, 1
    %v454 = vsel %vm259, %v451, %v453
    %v455 = vrot.slane %v377, 1
    %v456 = vrot.slane %v378, 1
    %v457 = vsel %vm259, %v455, %v456
    %v458 = vrot.slane %v379, 1
    %v459 = vsel %vm259, %v456, %v458
    %460 = vrot.lane.b32.xlu0 %v412, 127
    %v461 = vpop.permute.xlu0 %460
    %462 = vrot.lane.b32.xlu0 %v414, 127
    %v463 = vpop.permute.xlu0 %462
    %464 = vrot.lane.b32.xlu0 %v417, 127
    %v465 = vpop.permute.xlu0 %464
    %466 = vrot.lane.b32.xlu0 %v419, 127
    %v467 = vpop.permute.xlu0 %466
    %468 = vrot.lane.b32.xlu0 %v422, 127
    %v469 = vpop.permute.xlu0 %468
    %470 = vrot.lane.b32.xlu0 %v424, 127
    %v471 = vpop.permute.xlu0 %470
    %472 = vrot.lane.b32.xlu0 %v427, 127
    %v473 = vpop.permute.xlu0 %472
    %474 = vrot.lane.b32.xlu0 %v429, 127
    %v475 = vpop.permute.xlu0 %474
    %476 = vrot.lane.b32.xlu0 %v432, 127
    %v477 = vpop.permute.xlu0 %476
    %478 = vrot.lane.b32.xlu0 %v434, 127
    %v479 = vpop.permute.xlu0 %478
    %480 = vrot.lane.b32.xlu0 %v437, 127
    %v481 = vpop.permute.xlu0 %480
    %482 = vrot.lane.b32.xlu0 %v439, 127
    %v483 = vpop.permute.xlu0 %482
    %484 = vrot.lane.b32.xlu0 %v442, 127
    %v485 = vpop.permute.xlu0 %484
    %486 = vrot.lane.b32.xlu0 %v444, 127
    %v487 = vpop.permute.xlu0 %486
    %488 = vrot.lane.b32.xlu0 %v447, 127
    %v489 = vpop.permute.xlu0 %488
    %490 = vrot.lane.b32.xlu0 %v449, 127
    %v491 = vpop.permute.xlu0 %490
    %492 = vrot.lane.b32.xlu0 %v452, 127
    %v493 = vpop.permute.xlu0 %492
    %494 = vrot.lane.b32.xlu0 %v454, 127
    %v495 = vpop.permute.xlu0 %494
    %496 = vrot.lane.b32.xlu0 %v457, 127
    %v497 = vpop.permute.xlu0 %496
    %498 = vrot.lane.b32.xlu0 %v459, 127
    %v499 = vpop.permute.xlu0 %498
    %v520 = vadd.f32 %v330, %v461
    %v521 = vadd.f32 %v331, %v463
    %v522 = vadd.f32 %v332, %v465
    %v523 = vadd.f32 %v333, %v467
    %v524 = vadd.f32 %v334, %v469
    %v525 = vadd.f32 %v335, %v471
    %v526 = vadd.f32 %v336, %v473
    %v527 = vadd.f32 %v337, %v475
    %v528 = vadd.f32 %v338, %v477
    %v529 = vadd.f32 %v339, %v479
    %v530 = vadd.f32 %v340, %v481
    %v531 = vadd.f32 %v341, %v483
    %v532 = vadd.f32 %v342, %v485
    %v533 = vadd.f32 %v343, %v487
    %v534 = vadd.f32 %v344, %v489
    %v535 = vadd.f32 %v345, %v491
    %v536 = vadd.f32 %v346, %v493
    %v537 = vadd.f32 %v347, %v495
    %v538 = vadd.f32 %v348, %v497
    %v539 = vadd.f32 %v349, %v499
    %540 = vrot.lane.b32.xlu0 %v262, 126
    %v541 = vpop.permute.xlu0 %540
    %542 = vrot.lane.b32.xlu0 %v264, 126
    %v543 = vpop.permute.xlu0 %542
    %544 = vrot.lane.b32.xlu0 %v267, 126
    %v545 = vpop.permute.xlu0 %544
    %546 = vrot.lane.b32.xlu0 %v269, 126
    %v547 = vpop.permute.xlu0 %546
    %548 = vrot.lane.b32.xlu0 %v272, 126
    %v549 = vpop.permute.xlu0 %548
    %550 = vrot.lane.b32.xlu0 %v274, 126
    %v551 = vpop.permute.xlu0 %550
    %552 = vrot.lane.b32.xlu0 %v277, 126
    %v553 = vpop.permute.xlu0 %552
    %554 = vrot.lane.b32.xlu0 %v279, 126
    %v555 = vpop.permute.xlu0 %554
    %556 = vrot.lane.b32.xlu0 %v282, 126
    %v557 = vpop.permute.xlu0 %556
    %558 = vrot.lane.b32.xlu0 %v284, 126
    %v559 = vpop.permute.xlu0 %558
    %560 = vrot.lane.b32.xlu0 %v287, 126
    %v561 = vpop.permute.xlu0 %560
    %562 = vrot.lane.b32.xlu0 %v289, 126
    %v563 = vpop.permute.xlu0 %562
    %564 = vrot.lane.b32.xlu0 %v292, 126
    %v565 = vpop.permute.xlu0 %564
    %566 = vrot.lane.b32.xlu0 %v294, 126
    %v567 = vpop.permute.xlu0 %566
    %568 = vrot.lane.b32.xlu0 %v297, 126
    %v569 = vpop.permute.xlu0 %568
    %570 = vrot.lane.b32.xlu0 %v299, 126
    %v571 = vpop.permute.xlu0 %570
    %572 = vrot.lane.b32.xlu0 %v302, 126
    %v573 = vpop.permute.xlu0 %572
    %574 = vrot.lane.b32.xlu0 %v304, 126
    %v575 = vpop.permute.xlu0 %574
    %576 = vrot.lane.b32.xlu0 %v307, 126
    %v577 = vpop.permute.xlu0 %576
    %578 = vrot.lane.b32.xlu0 %v309, 126
    %v579 = vpop.permute.xlu0 %578
    %v600 = vadd.f32 %v520, %v541
    %v601 = vadd.f32 %v521, %v543
    %v602 = vadd.f32 %v522, %v545
    %v603 = vadd.f32 %v523, %v547
    %v604 = vadd.f32 %v524, %v549
    %v605 = vadd.f32 %v525, %v551
    %v606 = vadd.f32 %v526, %v553
    %v607 = vadd.f32 %v527, %v555
    %v608 = vadd.f32 %v528, %v557
    %v609 = vadd.f32 %v529, %v559
    %v610 = vadd.f32 %v530, %v561
    %v611 = vadd.f32 %v531, %v563
    %v612 = vadd.f32 %v532, %v565
    %v613 = vadd.f32 %v533, %v567
    %v614 = vadd.f32 %v534, %v569
    %v615 = vadd.f32 %v535, %v571
    %v616 = vadd.f32 %v536, %v573
    %v617 = vadd.f32 %v537, %v575
    %v618 = vadd.f32 %v538, %v577
    %v619 = vadd.f32 %v539, %v579
    %vm620 = vcmask 1045504
    %v621 = vrot.slane %v39, 2
    %v622 = vrot.slane %v40, 2
    %v623 = vsel %vm620, %v621, %v622
    %v624 = vrot.slane %v239, 2
    %v625 = vsel %vm620, %v622, %v624
    %v626 = vrot.slane %v41, 2
    %v627 = vrot.slane %v42, 2
    %v628 = vsel %vm620, %v626, %v627
    %v629 = vrot.slane %v240, 2
    %v630 = vsel %vm620, %v627, %v629
    %v631 = vrot.slane %v43, 2
    %v632 = vrot.slane %v44, 2
    %v633 = vsel %vm620, %v631, %v632
    %v634 = vrot.slane %v241, 2
    %v635 = vsel %vm620, %v632, %v634
    %v636 = vrot.slane %v45, 2
    %v637 = vrot.slane %v46, 2
    %v638 = vsel %vm620, %v636, %v637
    %v639 = vrot.slane %v242, 2
    %v640 = vsel %vm620, %v637, %v639
    %v641 = vrot.slane %v47, 2
    %v642 = vrot.slane %v48, 2
    %v643 = vsel %vm620, %v641, %v642
    %v644 = vrot.slane %v243, 2
    %v645 = vsel %vm620, %v642, %v644
    %v646 = vrot.slane %v49, 2
    %v647 = vrot.slane %v50, 2
    %v648 = vsel %vm620, %v646, %v647
    %v649 = vrot.slane %v244, 2
    %v650 = vsel %vm620, %v647, %v649
    %v651 = vrot.slane %v51, 2
    %v652 = vrot.slane %v52, 2
    %v653 = vsel %vm620, %v651, %v652
    %v654 = vrot.slane %v245, 2
    %v655 = vsel %vm620, %v652, %v654
    %v656 = vrot.slane %v53, 2
    %v657 = vrot.slane %v54, 2
    %v658 = vsel %vm620, %v656, %v657
    %v659 = vrot.slane %v246, 2
    %v660 = vsel %vm620, %v657, %v659
    %v661 = vrot.slane %v55, 2
    %v662 = vrot.slane %v56, 2
    %v663 = vsel %vm620, %v661, %v662
    %v664 = vrot.slane %v247, 2
    %v665 = vsel %vm620, %v662, %v664
    %v666 = vrot.slane %v57, 2
    %v667 = vrot.slane %v58, 2
    %v668 = vsel %vm620, %v666, %v667
    %v669 = vrot.slane %v248, 2
    %v670 = vsel %vm620, %v667, %v669
    %v691 = vadd.f32 %v600, %v623
    %v692 = vadd.f32 %v601, %v625
    %v693 = vadd.f32 %v602, %v628
    %v694 = vadd.f32 %v603, %v630
    %v695 = vadd.f32 %v604, %v633
    %v696 = vadd.f32 %v605, %v635
    %v697 = vadd.f32 %v606, %v638
    %v698 = vadd.f32 %v607, %v640
    %v699 = vadd.f32 %v608, %v643
    %v700 = vadd.f32 %v609, %v645
    %v701 = vadd.f32 %v610, %v648
    %v702 = vadd.f32 %v611, %v650
    %v703 = vadd.f32 %v612, %v653
    %v704 = vadd.f32 %v613, %v655
    %v705 = vadd.f32 %v614, %v658
    %v706 = vadd.f32 %v615, %v660
    %v707 = vadd.f32 %v616, %v663
    %v708 = vadd.f32 %v617, %v665
    %v709 = vadd.f32 %v618, %v668
    %v710 = vadd.f32 %v619, %v670
    %711 = vrot.lane.b32.xlu0 %v623, 127
    %v712 = vpop.permute.xlu0 %711
    %713 = vrot.lane.b32.xlu0 %v625, 127
    %v714 = vpop.permute.xlu0 %713
    %715 = vrot.lane.b32.xlu0 %v628, 127
    %v716 = vpop.permute.xlu0 %715
    %717 = vrot.lane.b32.xlu0 %v630, 127
    %v718 = vpop.permute.xlu0 %717
    %719 = vrot.lane.b32.xlu0 %v633, 127
    %v720 = vpop.permute.xlu0 %719
    %721 = vrot.lane.b32.xlu0 %v635, 127
    %v722 = vpop.permute.xlu0 %721
    %723 = vrot.lane.b32.xlu0 %v638, 127
    %v724 = vpop.permute.xlu0 %723
    %725 = vrot.lane.b32.xlu0 %v640, 127
    %v726 = vpop.permute.xlu0 %725
    %727 = vrot.lane.b32.xlu0 %v643, 127
    %v728 = vpop.permute.xlu0 %727
    %729 = vrot.lane.b32.xlu0 %v645, 127
    %v730 = vpop.permute.xlu0 %729
    %731 = vrot.lane.b32.xlu0 %v648, 127
    %v732 = vpop.permute.xlu0 %731
    %733 = vrot.lane.b32.xlu0 %v650, 127
    %v734 = vpop.permute.xlu0 %733
    %735 = vrot.lane.b32.xlu0 %v653, 127
    %v736 = vpop.permute.xlu0 %735
    %737 = vrot.lane.b32.xlu0 %v655, 127
    %v738 = vpop.permute.xlu0 %737
    %739 = vrot.lane.b32.xlu0 %v658, 127
    %v740 = vpop.permute.xlu0 %739
    %741 = vrot.lane.b32.xlu0 %v660, 127
    %v742 = vpop.permute.xlu0 %741
    %743 = vrot.lane.b32.xlu0 %v663, 127
    %v744 = vpop.permute.xlu0 %743
    %745 = vrot.lane.b32.xlu0 %v665, 127
    %v746 = vpop.permute.xlu0 %745
    %747 = vrot.lane.b32.xlu0 %v668, 127
    %v748 = vpop.permute.xlu0 %747
    %749 = vrot.lane.b32.xlu0 %v670, 127
    %v750 = vpop.permute.xlu0 %749
    %v771 = vadd.f32 %v691, %v712
    %v772 = vadd.f32 %v692, %v714
    %v773 = vadd.f32 %v693, %v716
    %v774 = vadd.f32 %v694, %v718
    %v775 = vadd.f32 %v695, %v720
    %v776 = vadd.f32 %v696, %v722
    %v777 = vadd.f32 %v697, %v724
    %v778 = vadd.f32 %v698, %v726
    %v779 = vadd.f32 %v699, %v728
    %v780 = vadd.f32 %v700, %v730
    %v781 = vadd.f32 %v701, %v732
    %v782 = vadd.f32 %v702, %v734
    %v783 = vadd.f32 %v703, %v736
    %v784 = vadd.f32 %v704, %v738
    %v785 = vadd.f32 %v705, %v740
    %v786 = vadd.f32 %v706, %v742
    %v787 = vadd.f32 %v707, %v744
    %v788 = vadd.f32 %v708, %v746
    %v789 = vadd.f32 %v709, %v748
    %v790 = vadd.f32 %v710, %v750
    %791 = vrot.lane.b32.xlu0 %v623, 126
    %v792 = vpop.permute.xlu0 %791
    %793 = vrot.lane.b32.xlu0 %v625, 126
    %v794 = vpop.permute.xlu0 %793
    %795 = vrot.lane.b32.xlu0 %v628, 126
    %v796 = vpop.permute.xlu0 %795
    %797 = vrot.lane.b32.xlu0 %v630, 126
    %v798 = vpop.permute.xlu0 %797
    %799 = vrot.lane.b32.xlu0 %v633, 126
    %v800 = vpop.permute.xlu0 %799
    %801 = vrot.lane.b32.xlu0 %v635, 126
    %v802 = vpop.permute.xlu0 %801
    %803 = vrot.lane.b32.xlu0 %v638, 126
    %v804 = vpop.permute.xlu0 %803
    %805 = vrot.lane.b32.xlu0 %v640, 126
    %v806 = vpop.permute.xlu0 %805
    %807 = vrot.lane.b32.xlu0 %v643, 126
    %v808 = vpop.permute.xlu0 %807
    %809 = vrot.lane.b32.xlu0 %v645, 126
    %v810 = vpop.permute.xlu0 %809
    %811 = vrot.lane.b32.xlu0 %v648, 126
    %v812 = vpop.permute.xlu0 %811
    %813 = vrot.lane.b32.xlu0 %v650, 126
    %v814 = vpop.permute.xlu0 %813
    %815 = vrot.lane.b32.xlu0 %v653, 126
    %v816 = vpop.permute.xlu0 %815
    %817 = vrot.lane.b32.xlu0 %v655, 126
    %v818 = vpop.permute.xlu0 %817
    %819 = vrot.lane.b32.xlu0 %v658, 126
    %v820 = vpop.permute.xlu0 %819
    %821 = vrot.lane.b32.xlu0 %v660, 126
    %v822 = vpop.permute.xlu0 %821
    %823 = vrot.lane.b32.xlu0 %v663, 126
    %v824 = vpop.permute.xlu0 %823
    %825 = vrot.lane.b32.xlu0 %v665, 126
    %v826 = vpop.permute.xlu0 %825
    %827 = vrot.lane.b32.xlu0 %v668, 126
    %v828 = vpop.permute.xlu0 %827
    %829 = vrot.lane.b32.xlu0 %v670, 126
    %v830 = vpop.permute.xlu0 %829
    %v851 = vadd.f32 %v771, %v792
    %v852 = vadd.f32 %v772, %v794
    %v853 = vadd.f32 %v773, %v796
    %v854 = vadd.f32 %v774, %v798
    %v855 = vadd.f32 %v775, %v800
    %v856 = vadd.f32 %v776, %v802
    %v857 = vadd.f32 %v777, %v804
    %v858 = vadd.f32 %v778, %v806
    %v859 = vadd.f32 %v779, %v808
    %v860 = vadd.f32 %v780, %v810
    %v861 = vadd.f32 %v781, %v812
    %v862 = vadd.f32 %v782, %v814
    %v863 = vadd.f32 %v783, %v816
    %v864 = vadd.f32 %v784, %v818
    %v865 = vadd.f32 %v785, %v820
    %v866 = vadd.f32 %v786, %v822
    %v867 = vadd.f32 %v787, %v824
    %v868 = vadd.f32 %v788, %v826
    %v869 = vadd.f32 %v789, %v828
    %v870 = vadd.f32 %v790, %v830
    %vm871 = vcmask 130048
    %872 = vst.msk [vmem:[#allocation2] sm:$0xff] %vm871, %v851
    %873 = vst.msk [vmem:[#allocation2 + $0x8] sm:$0xff] %vm871, %v852
    %874 = vst.msk [vmem:[#allocation2 + $0x10] sm:$0xff] %vm871, %v853
    %875 = vst.msk [vmem:[#allocation2 + $0x18] sm:$0xff] %vm871, %v854
    %876 = vst.msk [vmem:[#allocation2 + $0x20] sm:$0xff] %vm871, %v855
    %877 = vst.msk [vmem:[#allocation2 + $0x28] sm:$0xff] %vm871, %v856
    %878 = vst.msk [vmem:[#allocation2 + $0x30] sm:$0xff] %vm871, %v857
    %879 = vst.msk [vmem:[#allocation2 + $0x38] sm:$0xff] %vm871, %v858
    %880 = vst.msk [vmem:[#allocation2 + $0x40] sm:$0xff] %vm871, %v859
    %881 = vst.msk [vmem:[#allocation2 + $0x48] sm:$0xff] %vm871, %v860
    %882 = vst.msk [vmem:[#allocation2 + $0x50] sm:$0xff] %vm871, %v861
    %883 = vst.msk [vmem:[#allocation2 + $0x58] sm:$0xff] %vm871, %v862
    %884 = vst.msk [vmem:[#allocation2 + $0x60] sm:$0xff] %vm871, %v863
    %885 = vst.msk [vmem:[#allocation2 + $0x68] sm:$0xff] %vm871, %v864
    %886 = vst.msk [vmem:[#allocation2 + $0x70] sm:$0xff] %vm871, %v865
    %887 = vst.msk [vmem:[#allocation2 + $0x78] sm:$0xff] %vm871, %v866
    %888 = vst.msk [vmem:[#allocation2 + $0x80] sm:$0xff] %vm871, %v867
    %889 = vst.msk [vmem:[#allocation2 + $0x88] sm:$0xff] %vm871, %v868
    %890 = vst.msk [vmem:[#allocation2 + $0x90] sm:$0xff] %vm871, %v869
    %891 = vst.msk [vmem:[#allocation2 + $0x98] sm:$0xff] %vm871, %v870
    // Predicated region
    $region6: #{highpass_conv.1} parent=1 // pred_check
      _
    $region7: #{highpass_conv.1} parent=1 // pred_check_branch
      %893 = sbr.rel (0) target = $region9
    $region8: #{highpass_conv.1} parent=1 // pred_region
      %s895 = ssub.s32 2560, 2560
      %896 = vsyncadd [#allocation3], %s895
      %s897 = sshll.u32 [#allocation2], 4
      %s898 = int_to_ptr.vmem [resolvable:$true] %s897
      %903 = dma.vmem_to_hbm [thread:$0]  %s898, 2560, %s1, [#allocation3], 128, 128, 8
    $region9: #{highpass_conv.1} parent=1 // pred_fallthru
      _
    // Predicated region
    $region10: #{highpass_conv.1} parent=1 // pred_check
      _
    $region11: #{highpass_conv.1} parent=1 // pred_check_branch
      %905 = sbr.rel (0) target = $region13
    $region12: #{highpass_conv.1} parent=1 // pred_region
      %906 = dma.done [#allocation3], 2560
    $region13: #{highpass_conv.1} parent=1 // pred_fallthru
      _
    %907 = vsyncpa [#allocation3], 1

</llo_original>
